<compile_context>
chip_gen: v6e
topology: v6e:2x2x1
jax: 0.10.0
libtpu: 0.0.40
codegen_flags: <defaults>
</compile_context>

<pallas_src>
from functools import partial

import jax
import jax.numpy as jnp
from jax import lax
from jax.experimental import pallas as pl
from jax.experimental.pallas import tpu as pltpu


_SUB = 256      # rows per in-kernel sub-tile (keeps the f32 `h` chunk small)
_TM_MAX = 4096  # max rows per grid step (x tile: 2 MiB f32 x 2 buffers in VMEM)


def _ceil_to(x, m):
    return -(-x // m) * m


def _choose_tiling(batch):
    """Returns (n_tiles, tm, sub): grid steps, rows per step, rows per sub-tile."""
    if batch <= _SUB:
        tm = _ceil_to(batch, 8)          # whole batch, single sub-tile
        return 1, tm, tm
    n_tiles = max(1, -(-batch // _TM_MAX))
    # >=2 grid steps for large batches so v7x's 2 TensorCores both get work
    # (harmless on single-TC v5e/v6e); skipped for mid-size batches where it
    # would only add padding + per-step overhead.
    if batch >= 4 * _SUB:
        n_tiles = max(n_tiles, 2)
    tm = _ceil_to(-(-batch // n_tiles), _SUB)
    return n_tiles, tm, _SUB


def mlp_kernel(x_ref, w1_ref, b1_ref, w2_ref, b2_ref, o_ref, *, sub):
    # Weights / biases are VMEM-resident across the whole grid (constant block).
    w1 = w1_ref[...]        # (D, D) bf16
    b1 = b1_ref[...]        # (1, D) f32
    w2 = w2_ref[...]        # (1, D) f32
    b2 = b2_ref[0]          # SMEM scalar
    n_sub = o_ref.shape[0] // sub

    def body(s, carry):
        r = pl.multiple_of(s * sub, sub)
        # fc1 on the MXU: in-kernel f32->bf16 cast (VPU slack), f32 accumulation.
        xb = x_ref[pl.ds(r, sub), :].astype(jnp.bfloat16)
        h = jnp.dot(xb, w1, preferred_element_type=jnp.float32)
        # Bias + ReLU in f32 on the VPU. dropout(p=0.2) -> identity at inference.
        # TODO(synk): training-mode dropout (pltpu.prng_seed + prng_random_bits mask) omitted.
        h = jnp.maximum(h + b1, 0.0)
        # fc2 as VPU multiply + XLU lane reduction + SMEM scalar bias.
        o = jnp.sum(h * w2, axis=-1, keepdims=True) + b2
        o_ref[pl.ds(r, sub), :] = o.astype(o_ref.dtype)
        return carry

    lax.fori_loop(0, n_sub, body, 0, unroll=True)


def prepare_params(fc1_w, fc1_b, fc2_w, fc2_b):
    """One-time parameter prep, hoisted out of the per-call path.
    PyTorch layouts: fc1_w (D, D), fc1_b (D,), fc2_w (1, D), fc2_b (1,)."""
    D = fc1_w.shape[1]
    return (
        jnp.asarray(fc1_w).T.astype(jnp.bfloat16),              # (D, D), x @ W layout
        jnp.asarray(fc1_b).reshape(1, D).astype(jnp.float32),   # (1, D)
        jnp.asarray(fc2_w).reshape(1, D).astype(jnp.float32),   # (1, D)
        jnp.asarray(fc2_b).reshape(1).astype(jnp.float32),      # (1,) SMEM scalar
    )


@jax.jit
def simple_classifier_forward(x, params):
    """x: (B, D) f32. Computes fc2(relu(fc1(x))); dropout = identity."""
    w1_t, b1_2d, w2_row, b2_1d = params
    B, D = x.shape
    out_dtype = x.dtype

    n_tiles, tm, sub = _choose_tiling(B)
    Bp = n_tiles * tm
    if Bp != B:
        x = jnp.pad(x, ((0, Bp - B), (0, 0)))

    flops = 2 * Bp * D * D + 3 * Bp * D
    bytes_accessed = (
        Bp * D * 4            # x (f32 in HBM; cast to bf16 in-kernel)
        + D * D * 2           # w1 (bf16)
        + D * 4 + D * 4 + 4   # b1, w2, b2 (f32)
        + Bp * 4              # out (f32)
    )

    out = pl.pallas_call(
        partial(mlp_kernel, sub=sub),
        out_shape=jax.ShapeDtypeStruct((Bp, 1), out_dtype),
        grid=(n_tiles,),
        in_specs=[
            pl.BlockSpec((tm, D), lambda i: (i, 0)),              # x tile (f32)
            pl.BlockSpec((D, D), lambda i: (0, 0)),               # w1, VMEM-resident
            pl.BlockSpec((1, D), lambda i: (0, 0)),               # b1, VMEM-resident
            pl.BlockSpec((1, D), lambda i: (0, 0)),               # w2, VMEM-resident
            pl.BlockSpec(memory_space=pltpu.MemorySpace.SMEM),    # b2 scalar
        ],
        out_specs=pl.BlockSpec((tm, 1), lambda i: (i, 0)),
        compiler_params=pltpu.CompilerParams(
            dimension_semantics=("parallel",)),                   # 2-TC sharding on v7x
        cost_estimate=pl.CostEstimate(
            flops=flops, transcendentals=0, bytes_accessed=bytes_accessed),
    )(x, w1_t, b1_2d, w2_row, b2_1d)

    return out[:B]


if __name__ == "__main__":
    D = 128  # input_dim

    key = jax.random.PRNGKey(0)
    kx, k1, kb1, k2, kb2 = jax.random.split(key, 5)

    # Deterministic params (PyTorch shapes: fc1.weight (D, D), fc1.bias (D,),
    # fc2.weight (1, D), fc2.bias (1,)).
    fc1_w = jax.random.normal(k1, (D, D), dtype=jnp.float32) * (1.0 / jnp.sqrt(D))
    fc1_b = jax.random.normal(kb1, (D,), dtype=jnp.float32) * 0.01
    fc2_w = jax.random.normal(k2, (1, D), dtype=jnp.float32) * (1.0 / jnp.sqrt(D))
    fc2_b = jax.random.normal(kb2, (1,), dtype=jnp.float32) * 0.01
    params = prepare_params(fc1_w, fc1_b, fc2_w, fc2_b)   # one-time prep

    def check(B):
        x = jax.random.normal(jax.random.fold_in(kx, B), (B, D), dtype=jnp.float32)
        out = jax.block_until_ready(simple_classifier_forward(x, params))
        assert out.shape == (B, 1)
        # Tight reference: same bf16-in / f32-acc math as the kernel.
        h_ref = jnp.maximum(
            jnp.dot(x.astype(jnp.bfloat16), fc1_w.T.astype(jnp.bfloat16),
                    preferred_element_type=jnp.float32) + fc1_b, 0.0)
        ref = jnp.sum(h_ref * fc2_w.reshape(1, D), axis=-1, keepdims=True) + fc2_b
        assert jnp.allclose(out, ref, atol=1e-3, rtol=1e-3)
        # Loose reference: full-f32 PyTorch math (budget for bf16 quantization).
        ref_f32 = jnp.maximum(x @ fc1_w.T + fc1_b, 0.0) @ fc2_w.T + fc2_b
        assert jnp.allclose(out, ref_f32, atol=5e-2, rtol=5e-2)

    check(8)     # small batch: single tile, single sub-tile
    check(300)   # padded tile exercising the in-kernel sub-tile loop
    print("KERNEL_OK")
</pallas_src>

<mosaic_0001>
module attributes {stable_mosaic.version = 11 : i64} {
  func.func @mlp_kernel(%arg0: i32, %arg1: memref<8x128xf32, #tpu.memory_space<vmem>>, %arg2: memref<128x128xbf16, #tpu.memory_space<vmem>>, %arg3: memref<1x128xf32, #tpu.memory_space<vmem>>, %arg4: memref<1x128xf32, #tpu.memory_space<vmem>>, %arg5: memref<1xf32, #tpu.memory_space<smem>>, %arg6: memref<8x1xf32, #tpu.memory_space<vmem>>) attributes {dimension_semantics = [#tpu.dimension_semantics<parallel>], iteration_bounds = array<i64: 1>, scalar_prefetch = 0 : i64, scratch_operands = 0 : i64, tpu.core_type = #tpu.core_type<tc>, window_params = [{transform_indices = @transform_0, window_bounds = array<i64: 8, 128>}, {pipeline_mode = #tpu.pipeline_mode<synchronous>, transform_indices = @transform_1, window_bounds = array<i64: 128, 128>}, {pipeline_mode = #tpu.pipeline_mode<synchronous>, transform_indices = @transform_2, window_bounds = array<i64: 1, 128>}, {pipeline_mode = #tpu.pipeline_mode<synchronous>, transform_indices = @transform_3, window_bounds = array<i64: 1, 128>}, {transform_indices = @transform_4, window_bounds = array<i64: 1>}, {transform_indices = @transform_5, window_bounds = array<i64: 8, 1>}]} {
    %c0 = arith.constant 0 : index
    %c0_0 = arith.constant 0 : index
    %0 = vector.load %arg2[%c0, %c0_0] : memref<128x128xbf16, #tpu.memory_space<vmem>>, vector<128x128xbf16>
    %c0_1 = arith.constant 0 : index
    %c0_2 = arith.constant 0 : index
    %1 = vector.load %arg3[%c0_1, %c0_2] : memref<1x128xf32, #tpu.memory_space<vmem>>, vector<1x128xf32>
    %c0_3 = arith.constant 0 : index
    %c0_4 = arith.constant 0 : index
    %2 = vector.load %arg4[%c0_3, %c0_4] : memref<1x128xf32, #tpu.memory_space<vmem>>, vector<1x128xf32>
    %c0_5 = arith.constant 0 : index
    %3 = memref.load %arg5[%c0_5] : memref<1xf32, #tpu.memory_space<smem>>
    %c0_i32 = arith.constant 0 : i32
    %c8_i32 = arith.constant 8 : i32
    %4 = arith.muli %c0_i32, %c8_i32 : i32
    %5 = tpu.assume_multiple %4, 8 : i32
    %6 = arith.index_cast %5 : i32 to index
    %c0_6 = arith.constant 0 : index
    %7 = vector.load %arg1[%6, %c0_6] : memref<8x128xf32, #tpu.memory_space<vmem>>, vector<8x128xf32>
    %8 = arith.truncf %7 : vector<8x128xf32> to vector<8x128xbf16>
    %cst = arith.constant dense<0.000000e+00> : vector<8x128xf32>
    %9 = tpu.matmul %8, %0, %cst {dimension_numbers = #tpu.dot_dimension_numbers<[1], [0], [0], [1], [0, 0, 1, 1], [], []>} : vector<8x128xbf16>, vector<128x128xbf16>, vector<8x128xf32> -> vector<8x128xf32>
    %10 = vector.broadcast %1 : vector<1x128xf32> to vector<8x128xf32>
    %11 = arith.addf %9, %10 : vector<8x128xf32>
    %cst_7 = arith.constant 0.000000e+00 : f32
    %12 = vector.broadcast %cst_7 : f32 to vector<8x128xf32>
    %13 = arith.maximumf %11, %12 : vector<8x128xf32>
    %14 = vector.broadcast %2 : vector<1x128xf32> to vector<8x128xf32>
    %15 = arith.mulf %13, %14 : vector<8x128xf32>
    %cst_8 = arith.constant dense<0.000000e+00> : vector<8xf32>
    %16 = vector.multi_reduction <add>, %15, %cst_8 [1] : vector<8x128xf32> to vector<8xf32>
    %17 = vector.shape_cast %16 : vector<8xf32> to vector<8x1xf32>
    %18 = vector.broadcast %3 : f32 to vector<8x1xf32>
    %19 = arith.addf %17, %18 : vector<8x1xf32>
    %20 = arith.index_cast %5 : i32 to index
    %c0_9 = arith.constant 0 : index
    %21 = vector.load %arg6[%20, %c0_9] : memref<8x1xf32, #tpu.memory_space<vmem>>, vector<8x1xf32>
    tpu.vector_store %arg6[%20, %c0_9], %19 {strides = array<i32>} : memref<8x1xf32, #tpu.memory_space<vmem>>, vector<8x1xf32>,
    %c1_i32 = arith.constant 1 : i32
    return
  }
  func.func @transform_0(%arg0: i32) -> (i32, i32) {
    %c0_i32 = arith.constant 0 : i32
    %c0_i32_0 = arith.constant 0 : i32
    return %arg0, %c0_i32 : i32, i32
  }
  func.func @transform_1(%arg0: i32) -> (i32, i32) {
    %c0_i32 = arith.constant 0 : i32
    %c0_i32_0 = arith.constant 0 : i32
    %c0_i32_1 = arith.constant 0 : i32
    return %c0_i32, %c0_i32_0 : i32, i32
  }
  func.func @transform_2(%arg0: i32) -> (i32, i32) {
    %c0_i32 = arith.constant 0 : i32
    %c0_i32_0 = arith.constant 0 : i32
    %c0_i32_1 = arith.constant 0 : i32
    return %c0_i32, %c0_i32_0 : i32, i32
  }
  func.func @transform_3(%arg0: i32) -> (i32, i32) {
    %c0_i32 = arith.constant 0 : i32
    %c0_i32_0 = arith.constant 0 : i32
    %c0_i32_1 = arith.constant 0 : i32
    return %c0_i32, %c0_i32_0 : i32, i32
  }
  func.func @transform_4(%arg0: i32) -> i32 {
    %c0_i32 = arith.constant 0 : i32
    %c0_i32_0 = arith.constant 0 : i32
    return %c0_i32 : i32
  }
  func.func @transform_5(%arg0: i32) -> (i32, i32) {
    %c0_i32 = arith.constant 0 : i32
    %c0_i32_0 = arith.constant 0 : i32
    return %arg0, %c0_i32 : i32, i32
  }
}

</mosaic_0001>

<llo_original>
// kernel: simple_classifier_forward.1
$region0: #{simple_classifier_forward.1}
  #allocation0 [shape = 'u32[]', space=smem, size = 0x4, offset = 0x4, fixed_abs, tag = 'smem constant byte address 0x4 - core index']
  #allocation1 [shape = 'u32[144,128]{1,0:T(1,128)}', space=vmem, size = 0x12000, scoped, tag = 'internal scratch']
  #allocation2 [shape = 'f32[1]{0:T(128)S(6)}', space=smem, size = 0x200, scoped, tag = 'scoped memory for simple_classifier_forward.1']
  %s0 = inlined_call_operand.hbm [shape: f32[8,128], index: 0, kind: input, shape index: {}]
  %s1 = inlined_call_operand.hbm [shape: bf16[128,128], index: 1, kind: input, shape index: {}]
  %s2 = inlined_call_operand.vmem [shape: f32[1,128], index: 2, kind: input, shape index: {}]
  %s3 = inlined_call_operand.vmem [shape: f32[1,128], index: 3, kind: input, shape index: {}]
  %s4 = inlined_call_operand.<no memory space> [shape: f32[1], index: 4, kind: input, shape index: {}]
  %s5 = inlined_call_operand.vmem [shape: f32[8,1], index: 5, kind: output, shape index: {}]
  %s6 = sld [smem:[#allocation0]]
  $region38: #{simple_classifier_forward.1} parent=0
    _
  %s8 = ssub.s32 1, %s6
  %s9 = scalar_select 0, %s8, %s6
  %10 = sst [smem:[#allocation2]] %s4
  $region1: #{simple_classifier_forward.1} parent=0
    #allocation3 [shape = 'u8[4096]{0}', space=vmem, size = 0x1000, scoped, tag = 'input window, operand 0, single buffered']
    #allocation4 [shape = 's32[1]{0}', space=sflag, size = 0x4, scoped, tag = 'scoped memory for simple_classifier_forward.1']
    #allocation5 [shape = 'u8[32768]{0}', space=vmem, size = 0x8000, scoped, tag = 'input window, operand 1, single buffered']
    #allocation6 [shape = 's32[1]{0}', space=sflag, size = 0x4, scoped, tag = 'scoped memory for simple_classifier_forward.1']
    %11 = vsyncpa [#allocation4], 0
    %12 = vsyncpa [#allocation6], 0
    // Predicated region
    $region2: #{simple_classifier_forward.1} parent=1 // pred_check
      _
    $region3: #{simple_classifier_forward.1} parent=1 // pred_check_branch
      %14 = sbr.rel (0) target = $region5
    $region4: #{simple_classifier_forward.1} parent=1 // pred_region
      %s16 = ssub.s32 128, 128
      %17 = vsyncadd [#allocation4], %s16
      %s19 = sshll.u32 [#allocation3], 4
      %s20 = int_to_ptr.vmem [resolvable:$true] %s19
      %22 = dma.hbm_to_vmem [thread:$0]  %s0, 128, %s20, [#allocation4]
    $region5: #{simple_classifier_forward.1} parent=1 // pred_fallthru
      _
    // Predicated region
    $region6: #{simple_classifier_forward.1} parent=1 // pred_check
      _
    $region7: #{simple_classifier_forward.1} parent=1 // pred_check_branch
      %24 = sbr.rel (0) target = $region9
    $region8: #{simple_classifier_forward.1} parent=1 // pred_region
      %s26 = ssub.s32 1024, 1024
      %27 = vsyncadd [#allocation6], %s26
      %s28 = sshll.u32 [#allocation5], 4
      %s29 = int_to_ptr.vmem [resolvable:$true] %s28
      %34 = dma.hbm_to_vmem [thread:$0]  %s1, 1024, %s29, [#allocation6], 64, 64, 4
    $region9: #{simple_classifier_forward.1} parent=1 // pred_fallthru
      _
    // Predicated region
    $region10: #{simple_classifier_forward.1} parent=1 // pred_check
      _
    $region11: #{simple_classifier_forward.1} parent=1 // pred_check_branch
      %36 = sbr.rel (0) target = $region13
    $region12: #{simple_classifier_forward.1} parent=1 // pred_region
      _
    $region13: #{simple_classifier_forward.1} parent=1 // pred_fallthru
      _
    // Predicated region
    $region14: #{simple_classifier_forward.1} parent=1 // pred_check
      _
    $region15: #{simple_classifier_forward.1} parent=1 // pred_check_branch
      %38 = sbr.rel (0) target = $region17
    $region16: #{simple_classifier_forward.1} parent=1 // pred_region
      _
    $region17: #{simple_classifier_forward.1} parent=1 // pred_fallthru
      _
    // Predicated region
    $region18: #{simple_classifier_forward.1} parent=1 // pred_check
      _
    $region19: #{simple_classifier_forward.1} parent=1 // pred_check_branch
      %40 = sbr.rel (0) target = $region21
    $region20: #{simple_classifier_forward.1} parent=1 // pred_region
      _
    $region21: #{simple_classifier_forward.1} parent=1 // pred_fallthru
      _
    // Predicated region
    $region22: #{simple_classifier_forward.1} parent=1 // pred_check
      _
    $region23: #{simple_classifier_forward.1} parent=1 // pred_check_branch
      %42 = sbr.rel (0) target = $region25
    $region24: #{simple_classifier_forward.1} parent=1 // pred_region
      %43 = dma.done [#allocation4], 128
    $region25: #{simple_classifier_forward.1} parent=1 // pred_fallthru
      _
    // Predicated region
    $region26: #{simple_classifier_forward.1} parent=1 // pred_check
      _
    $region27: #{simple_classifier_forward.1} parent=1 // pred_check_branch
      %45 = sbr.rel (0) target = $region29
    $region28: #{simple_classifier_forward.1} parent=1 // pred_region
      %46 = dma.done [#allocation6], 1024
    $region29: #{simple_classifier_forward.1} parent=1 // pred_fallthru
      _
    %v48 = vld [vmem:[#allocation5] sm:$0xf]
    %v49 = vld [vmem:[#allocation5 + $0x4] sm:$0xf]
    %v50 = vld [vmem:[#allocation5 + $0x8] sm:$0xf]
    %v51 = vld [vmem:[#allocation5 + $0xc] sm:$0xf]
    %v52 = vld [vmem:[#allocation5 + $0x10] sm:$0xf]
    %v53 = vld [vmem:[#allocation5 + $0x14] sm:$0xf]
    %v54 = vld [vmem:[#allocation5 + $0x18] sm:$0xf]
    %v55 = vld [vmem:[#allocation5 + $0x1c] sm:$0xf]
    %v56 = vld [vmem:[#allocation5 + $0x20] sm:$0xf]
    %v57 = vld [vmem:[#allocation5 + $0x24] sm:$0xf]
    %v58 = vld [vmem:[#allocation5 + $0x28] sm:$0xf]
    %v59 = vld [vmem:[#allocation5 + $0x2c] sm:$0xf]
    %v60 = vld [vmem:[#allocation5 + $0x30] sm:$0xf]
    %v61 = vld [vmem:[#allocation5 + $0x34] sm:$0xf]
    %v62 = vld [vmem:[#allocation5 + $0x38] sm:$0xf]
    %v63 = vld [vmem:[#allocation5 + $0x3c] sm:$0xf]
    %v64 = vld [vmem:[%s2] sm:$0x1]
    %v65 = vld [vmem:[%s3] sm:$0x1]
    %s66 = sld [smem:[#allocation2]]
    %v67 = vld [vmem:[#allocation3] sm:$0xff]
    %v68 = vpack.c.bf16 %v67, %v67
    %v70 = vlaneseq
    %v71 = vshrl.u32 %v70, 7
    %v72 = vsub.s32 0, %v71
    %v73 = vrot.slane %v64, %v72
    %v91 = vunpack.c.l.b16 %v48
    %v92 = vunpack.c.l.b16 %v49
    %v93 = vunpack.c.l.b16 %v50
    %v94 = vunpack.c.l.b16 %v51
    %v95 = vunpack.c.l.b16 %v52
    %v96 = vunpack.c.l.b16 %v53
    %v97 = vunpack.c.l.b16 %v54
    %v98 = vunpack.c.l.b16 %v55
    %v99 = vunpack.c.l.b16 %v56
    %v100 = vunpack.c.l.b16 %v57
    %v101 = vunpack.c.l.b16 %v58
    %v102 = vunpack.c.l.b16 %v59
    %v103 = vunpack.c.l.b16 %v60
    %v104 = vunpack.c.l.b16 %v61
    %v105 = vunpack.c.l.b16 %v62
    %v106 = vunpack.c.l.b16 %v63
    %v107 = vpack.c.b16 %v92, %v91
    %v108 = vpack.c.b16 %v94, %v93
    %v109 = vpack.c.b16 %v96, %v95
    %v110 = vpack.c.b16 %v98, %v97
    %v111 = vpack.c.b16 %v100, %v99
    %v112 = vpack.c.b16 %v102, %v101
    %v113 = vpack.c.b16 %v104, %v103
    %v114 = vpack.c.b16 %v106, %v105
    %123 = vmatprep.subr.bf16.mxu0 0
    %124 = vmatpush1.bf16.msra.mxu0 %v114
    %125 = vmatprep.subr.bf16.mxu0 0
    %126 = vmatpush1.bf16.msra.mxu0 %v113
    %127 = vmatprep.subr.bf16.mxu0 0
    %128 = vmatpush1.bf16.msra.mxu0 %v112
    %129 = vmatprep.subr.bf16.mxu0 0
    %130 = vmatpush1.bf16.msra.mxu0 %v111
    %131 = vmatprep.subr.bf16.mxu0 0
    %132 = vmatpush1.bf16.msra.mxu0 %v110
    %133 = vmatprep.subr.bf16.mxu0 0
    %134 = vmatpush1.bf16.msra.mxu0 %v109
    %135 = vmatprep.subr.bf16.mxu0 0
    %136 = vmatpush1.bf16.msra.mxu0 %v108
    %137 = vmatprep.subr.bf16.mxu0 0
    %138 = vmatpush1.bf16.msra.mxu0 %v107
    %139 = vmatprep.subr.bf16.mxu0 0
    %140 = vmatpush2.bf16.msra.mxu0 0
    %141 = vmatprep.subr.bf16.mxu0 0
    %142 = vmatpush2.bf16.msra.mxu0 0
    %143 = vmatprep.subr.bf16.mxu0 0
    %144 = vmatpush2.bf16.msra.mxu0 0
    %145 = vmatprep.subr.bf16.mxu0 0
    %146 = vmatpush2.bf16.msra.mxu0 0
    %147 = vmatprep.subr.bf16.mxu0 0
    %148 = vmatpush2.bf16.msra.mxu0 0
    %149 = vmatprep.subr.bf16.mxu0 0
    %150 = vmatpush2.bf16.msra.mxu0 0
    %151 = vmatprep.subr.bf16.mxu0 0
    %152 = vmatpush2.bf16.msra.mxu0 0
    %153 = vmatprep.subr.bf16.mxu0 0
    %154 = vmatpush2.bf16.msra.mxu0 0
    %155 = vmatprep.mubr.bf16.mxu0 0
    %156 = vmatmul.mubr.bf16.gmra.mxu0 %v68
    %v157 = vpop.f32.mrf.mxu0
    %v158 = vadd.f32 %v73, %v157
    %v159 = vpop.f32.mrf.mxu0
    %v160 = vpop.f32.mrf.mxu0
    %v161 = vpop.f32.mrf.mxu0
    %162 = vdwg.mxu0
    %v163 = vmax.f32 %v158, 0.0
    %v165 = vlaneseq
    %v166 = vshrl.u32 %v165, 7
    %v167 = vsub.s32 0, %v166
    %v168 = vrot.slane %v65, %v167
    %v170 = vmul.f32 %v163, %v168
    %171 = vadd.xlane.f32.xlu0 %v170
    %v172 = vpop.xlane.xlu0 %171
    %v173 = vstv %s66
    %v174 = vadd.f32 %v172, %v173
    %vm175 = vcmask 7168
    %176 = vst.msk [vmem:[%s5] sm:$0xff] %vm175, %v174
    // Predicated region
    $region30: #{simple_classifier_forward.1} parent=1 // pred_check
      _
    $region31: #{simple_classifier_forward.1} parent=1 // pred_check_branch
      %178 = sbr.rel (0) target = $region33
    $region32: #{simple_classifier_forward.1} parent=1 // pred_region
      _
    $region33: #{simple_classifier_forward.1} parent=1 // pred_fallthru
      _
    // Predicated region
    $region34: #{simple_classifier_forward.1} parent=1 // pred_check
      _
    $region35: #{simple_classifier_forward.1} parent=1 // pred_check_branch
      %180 = sbr.rel (0) target = $region37
    $region36: #{simple_classifier_forward.1} parent=1 // pred_region
      _
    $region37: #{simple_classifier_forward.1} parent=1 // pred_fallthru
      _
    %181 = vsyncpa [#allocation4], 1
    %182 = vsyncpa [#allocation6], 1

</llo_original>
